<compile_context>
chip_gen: v6e
topology: v6e:2x2x1
jax: 0.10.0
libtpu: 0.0.40
codegen_flags: <defaults>
</compile_context>

<pallas_src>
import functools

import jax
import jax.numpy as jnp
from jax.experimental import pallas as pl
from jax.experimental.pallas import tpu as pltpu


def _round_up(x: int, m: int) -> int:
    return (x + m - 1) // m * m


def _decoder_kernel(x_ref, w1_ref, b1_ref, w2_ref, b2_ref, o_ref):
    # x_ref:  (TM, Lp)  bf16 tile of latent rows
    # w1_ref: (Lp, Hp)  bf16, grid-invariant (stays resident; no re-DMA)
    # b1_ref: (1,  Hp)  f32
    # w2_ref: (Hp, TN)  bf16, tiled along the output axis
    # b2_ref: (1,  TN)  f32
    # o_ref:  (TM, TN)  output tile
    h = jnp.dot(x_ref[...], w1_ref[...], preferred_element_type=jnp.float32)
    h = jnp.maximum(h + b1_ref[...], 0.0)                       # ReLU in f32
    y = jnp.dot(h.astype(w2_ref.dtype), w2_ref[...],
                preferred_element_type=jnp.float32) + b2_ref[...]
    o_ref[...] = jax.nn.sigmoid(y).astype(o_ref.dtype)          # EUP sigmoid


@functools.partial(jax.jit, static_argnames=("tile_m", "tile_n", "compute_dtype"))
def graph_decoder_forward(latent, w1, b1, w2, b2, *,
                          tile_m=256, tile_n=512,
                          compute_dtype=jnp.bfloat16):
    """latent: [N, L] -> sigmoid(relu(latent @ W1 + b1) @ W2 + b2): [N, O]."""
    N, L = latent.shape
    H = w1.shape[1]
    O = w2.shape[1]
    out_dtype = latent.dtype

    # Pad contraction / lane dims to multiples of 128 (MXU + lane-dense stores),
    # rows to a multiple of 16 (bf16 sublane packing).
    Lp = _round_up(L, 128)
    Hp = _round_up(H, 128)
    Op = _round_up(O, 128)

    tm = min(tile_m, _round_up(N, 16))
    Np = _round_up(N, tm)
    tn = min(tile_n, Op)
    Op = _round_up(Op, tn)

    # Zero padding is exact for this MLP (zeros contribute nothing to the dots;
    # padded output rows/cols are sliced off below).
    xp = jnp.pad(latent, ((0, Np - N), (0, Lp - L))).astype(compute_dtype)
    w1p = jnp.pad(w1, ((0, Lp - L), (0, Hp - H))).astype(compute_dtype)
    w2p = jnp.pad(w2, ((0, Hp - H), (0, Op - O))).astype(compute_dtype)
    b1p = jnp.pad(b1, (0, Hp - H)).astype(jnp.float32).reshape(1, Hp)
    b2p = jnp.pad(b2, (0, Op - O)).astype(jnp.float32).reshape(1, Op)

    grid = (Np // tm, Op // tn)

    in_itemsize = jnp.dtype(compute_dtype).itemsize
    out_itemsize = jnp.dtype(out_dtype).itemsize
    cost = pl.CostEstimate(
        flops=2 * Np * (Lp * Hp + Hp * Op),
        transcendentals=Np * Op,
        bytes_accessed=(Np * Lp + Lp * Hp + Hp * Op) * in_itemsize
                       + Np * Op * out_itemsize + (Hp + Op) * 4,
    )

    out = pl.pallas_call(
        _decoder_kernel,
        out_shape=jax.ShapeDtypeStruct((Np, Op), out_dtype),
        grid_spec=pltpu.PrefetchScalarGridSpec(
            num_scalar_prefetch=0,
            grid=grid,
            in_specs=[
                pl.BlockSpec((tm, Lp), lambda i, j: (i, 0)),   # latent row tile
                pl.BlockSpec((Lp, Hp), lambda i, j: (0, 0)),   # W1 (grid-invariant)
                pl.BlockSpec((1, Hp), lambda i, j: (0, 0)),    # b1
                pl.BlockSpec((Hp, tn), lambda i, j: (0, j)),   # W2 tile over O
                pl.BlockSpec((1, tn), lambda i, j: (0, j)),    # b2 tile over O
            ],
            out_specs=pl.BlockSpec((tm, tn), lambda i, j: (i, j)),
        ),
        compiler_params=pltpu.CompilerParams(
            dimension_semantics=("parallel", "parallel"),
            vmem_limit_bytes=48 * 1024 * 1024,   # headroom for big tiles, fits v7x
        ),
        cost_estimate=cost,
    )(xp, w1p, b1p, w2p, b2p)

    return out[:N, :O]


def init_params(key, latent_size, hidden_size, output_size, dtype=jnp.float32):
    """Deterministic init mirroring PyTorch nn.Linear default U(-1/sqrt(fan_in), .)."""
    k1, k2, k3, k4 = jax.random.split(key, 4)
    lim1 = 1.0 / jnp.sqrt(latent_size)
    lim2 = 1.0 / jnp.sqrt(hidden_size)
    w1 = jax.random.uniform(k1, (latent_size, hidden_size), dtype, -lim1, lim1)
    b1 = jax.random.uniform(k2, (hidden_size,), dtype, -lim1, lim1)
    w2 = jax.random.uniform(k3, (hidden_size, output_size), dtype, -lim2, lim2)
    b2 = jax.random.uniform(k4, (output_size,), dtype, -lim2, lim2)
    return w1, b1, w2, b2


if __name__ == "__main__":
    latent_size, hidden_size, output_size = 32, 64, 16
    N = 16  # number of nodes / rows of latent

    key = jax.random.PRNGKey(0)
    k_x, k_p = jax.random.split(key)
    latent = jax.random.normal(k_x, (N, latent_size), dtype=jnp.float32)
    w1, b1, w2, b2 = init_params(k_p, latent_size, hidden_size, output_size)

    adj_rec = graph_decoder_forward(latent, w1, b1, w2, b2)
    adj_rec = jax.block_until_ready(adj_rec)

    # Pure-JAX f32 reference of the forward semantics (kernel uses bf16 matmul
    # inputs with f32 accumulation, so allow a loose tolerance).
    ref = jax.nn.sigmoid(jnp.maximum(latent @ w1 + b1, 0.0) @ w2 + b2)
    assert adj_rec.shape == (N, output_size)
    assert jnp.allclose(adj_rec, ref, atol=2e-2), float(jnp.abs(adj_rec - ref).max())

    print("KERNEL_OK")
</pallas_src>

<mosaic_0001>
module attributes {stable_mosaic.version = 11 : i64} {
  func.func @_decoder_kernel(%arg0: i32, %arg1: i32, %arg2: memref<16x128xbf16, #tpu.memory_space<vmem>>, %arg3: memref<128x128xbf16, #tpu.memory_space<vmem>>, %arg4: memref<1x128xf32, #tpu.memory_space<vmem>>, %arg5: memref<128x128xbf16, #tpu.memory_space<vmem>>, %arg6: memref<1x128xf32, #tpu.memory_space<vmem>>, %arg7: memref<16x128xf32, #tpu.memory_space<vmem>>) attributes {dimension_semantics = [#tpu.dimension_semantics<parallel>, #tpu.dimension_semantics<parallel>], iteration_bounds = array<i64: 1, 1>, scalar_prefetch = 0 : i64, scratch_operands = 0 : i64, tpu.core_type = #tpu.core_type<tc>, window_params = [{transform_indices = @transform_0, window_bounds = array<i64: 16, 128>}, {pipeline_mode = #tpu.pipeline_mode<synchronous>, transform_indices = @transform_1, window_bounds = array<i64: 128, 128>}, {pipeline_mode = #tpu.pipeline_mode<synchronous>, transform_indices = @transform_2, window_bounds = array<i64: 1, 128>}, {transform_indices = @transform_3, window_bounds = array<i64: 128, 128>}, {transform_indices = @transform_4, window_bounds = array<i64: 1, 128>}, {transform_indices = @transform_5, window_bounds = array<i64: 16, 128>}]} {
    %c0 = arith.constant 0 : index
    %c0_0 = arith.constant 0 : index
    %0 = vector.load %arg2[%c0, %c0_0] : memref<16x128xbf16, #tpu.memory_space<vmem>>, vector<16x128xbf16>
    %c0_1 = arith.constant 0 : index
    %c0_2 = arith.constant 0 : index
    %1 = vector.load %arg3[%c0_1, %c0_2] : memref<128x128xbf16, #tpu.memory_space<vmem>>, vector<128x128xbf16>
    %cst = arith.constant dense<0.000000e+00> : vector<16x128xf32>
    %2 = tpu.matmul %0, %1, %cst {dimension_numbers = #tpu.dot_dimension_numbers<[1], [0], [0], [1], [0, 0, 1, 1], [], []>} : vector<16x128xbf16>, vector<128x128xbf16>, vector<16x128xf32> -> vector<16x128xf32>
    %c0_3 = arith.constant 0 : index
    %c0_4 = arith.constant 0 : index
    %3 = vector.load %arg4[%c0_3, %c0_4] : memref<1x128xf32, #tpu.memory_space<vmem>>, vector<1x128xf32>
    %4 = vector.broadcast %3 : vector<1x128xf32> to vector<16x128xf32>
    %5 = arith.addf %2, %4 : vector<16x128xf32>
    %cst_5 = arith.constant 0.000000e+00 : f32
    %6 = vector.broadcast %cst_5 : f32 to vector<16x128xf32>
    %7 = arith.maximumf %5, %6 : vector<16x128xf32>
    %8 = arith.truncf %7 : vector<16x128xf32> to vector<16x128xbf16>
    %c0_6 = arith.constant 0 : index
    %c0_7 = arith.constant 0 : index
    %9 = vector.load %arg5[%c0_6, %c0_7] : memref<128x128xbf16, #tpu.memory_space<vmem>>, vector<128x128xbf16>
    %cst_8 = arith.constant dense<0.000000e+00> : vector<16x128xf32>
    %10 = tpu.matmul %8, %9, %cst_8 {dimension_numbers = #tpu.dot_dimension_numbers<[1], [0], [0], [1], [0, 0, 1, 1], [], []>} : vector<16x128xbf16>, vector<128x128xbf16>, vector<16x128xf32> -> vector<16x128xf32>
    %c0_9 = arith.constant 0 : index
    %c0_10 = arith.constant 0 : index
    %11 = vector.load %arg6[%c0_9, %c0_10] : memref<1x128xf32, #tpu.memory_space<vmem>>, vector<1x128xf32>
    %12 = vector.broadcast %11 : vector<1x128xf32> to vector<16x128xf32>
    %13 = arith.addf %10, %12 : vector<16x128xf32>
    %14 = arith.negf %13 : vector<16x128xf32>
    %15 = math.exp %14 : vector<16x128xf32>
    %cst_11 = arith.constant 1.000000e+00 : f32
    %16 = vector.broadcast %cst_11 : f32 to vector<16x128xf32>
    %17 = arith.addf %16, %15 : vector<16x128xf32>
    %18 = arith.divf %16, %17 : vector<16x128xf32>
    %c0_12 = arith.constant 0 : index
    %c0_13 = arith.constant 0 : index
    %19 = vector.load %arg7[%c0_12, %c0_13] : memref<16x128xf32, #tpu.memory_space<vmem>>, vector<16x128xf32>
    tpu.vector_store %arg7[%c0_12, %c0_13], %18 {strides = array<i32>} : memref<16x128xf32, #tpu.memory_space<vmem>>, vector<16x128xf32>,
    return
  }
  func.func @transform_0(%arg0: i32, %arg1: i32) -> (i32, i32) {
    %c0_i32 = arith.constant 0 : i32
    %c0_i32_0 = arith.constant 0 : i32
    return %arg0, %c0_i32 : i32, i32
  }
  func.func @transform_1(%arg0: i32, %arg1: i32) -> (i32, i32) {
    %c0_i32 = arith.constant 0 : i32
    %c0_i32_0 = arith.constant 0 : i32
    %c0_i32_1 = arith.constant 0 : i32
    return %c0_i32, %c0_i32_0 : i32, i32
  }
  func.func @transform_2(%arg0: i32, %arg1: i32) -> (i32, i32) {
    %c0_i32 = arith.constant 0 : i32
    %c0_i32_0 = arith.constant 0 : i32
    %c0_i32_1 = arith.constant 0 : i32
    return %c0_i32, %c0_i32_0 : i32, i32
  }
  func.func @transform_3(%arg0: i32, %arg1: i32) -> (i32, i32) {
    %c0_i32 = arith.constant 0 : i32
    %c0_i32_0 = arith.constant 0 : i32
    return %c0_i32, %arg1 : i32, i32
  }
  func.func @transform_4(%arg0: i32, %arg1: i32) -> (i32, i32) {
    %c0_i32 = arith.constant 0 : i32
    %c0_i32_0 = arith.constant 0 : i32
    return %c0_i32, %arg1 : i32, i32
  }
  func.func @transform_5(%arg0: i32, %arg1: i32) -> (i32, i32) {
    %c0_i32 = arith.constant 0 : i32
    return %arg0, %arg1 : i32, i32
  }
}

</mosaic_0001>

<llo_original>
// kernel: graph_decoder_forward.1
$region0: #{graph_decoder_forward.1}
  #allocation0 [shape = 'u32[]', space=smem, size = 0x4, offset = 0x4, fixed_abs, tag = 'smem constant byte address 0x4 - core index']
  #allocation1 [shape = 'u32[144,128]{1,0:T(1,128)}', space=vmem, size = 0x12000, scoped, tag = 'internal scratch']
  %s0 = inlined_call_operand.vmem [shape: bf16[16,128], index: 0, kind: input, shape index: {}]
  %s1 = inlined_call_operand.vmem [shape: bf16[128,128], index: 1, kind: input, shape index: {}]
  %s2 = inlined_call_operand.vmem [shape: f32[1,128], index: 2, kind: input, shape index: {}]
  %s3 = inlined_call_operand.vmem [shape: bf16[128,128], index: 3, kind: input, shape index: {}]
  %s4 = inlined_call_operand.vmem [shape: f32[1,128], index: 4, kind: input, shape index: {}]
  %s5 = inlined_call_operand.hbm [shape: f32[16,128], index: 5, kind: output, shape index: {}]
  %s6 = sld [smem:[#allocation0]]
  $region30: #{graph_decoder_forward.1} parent=0
    _
  %s8 = ssub.s32 1, %s6
  %s9 = scalar_select 0, %s8, %s6
  $region1: #{graph_decoder_forward.1} parent=0
    #allocation2 [shape = 'u8[8192]{0}', space=vmem, size = 0x2000, scoped, tag = 'output window, operand 0, single buffered']
    #allocation3 [shape = 's32[1]{0}', space=sflag, size = 0x4, scoped, tag = 'scoped memory for graph_decoder_forward.1']
    %10 = vsyncpa [#allocation3], 0
    // Predicated region
    $region2: #{graph_decoder_forward.1} parent=1 // pred_check
      _
    $region3: #{graph_decoder_forward.1} parent=1 // pred_check_branch
      %12 = sbr.rel (0) target = $region5
    $region4: #{graph_decoder_forward.1} parent=1 // pred_region
      _
    $region5: #{graph_decoder_forward.1} parent=1 // pred_fallthru
      _
    // Predicated region
    $region6: #{graph_decoder_forward.1} parent=1 // pred_check
      _
    $region7: #{graph_decoder_forward.1} parent=1 // pred_check_branch
      %14 = sbr.rel (0) target = $region9
    $region8: #{graph_decoder_forward.1} parent=1 // pred_region
      _
    $region9: #{graph_decoder_forward.1} parent=1 // pred_fallthru
      _
    // Predicated region
    $region10: #{graph_decoder_forward.1} parent=1 // pred_check
      _
    $region11: #{graph_decoder_forward.1} parent=1 // pred_check_branch
      %16 = sbr.rel (0) target = $region13
    $region12: #{graph_decoder_forward.1} parent=1 // pred_region
      _
    $region13: #{graph_decoder_forward.1} parent=1 // pred_fallthru
      _
    // Predicated region
    $region14: #{graph_decoder_forward.1} parent=1 // pred_check
      _
    $region15: #{graph_decoder_forward.1} parent=1 // pred_check_branch
      %18 = sbr.rel (0) target = $region17
    $region16: #{graph_decoder_forward.1} parent=1 // pred_region
      _
    $region17: #{graph_decoder_forward.1} parent=1 // pred_fallthru
      _
    // Predicated region
    $region18: #{graph_decoder_forward.1} parent=1 // pred_check
      _
    $region19: #{graph_decoder_forward.1} parent=1 // pred_check_branch
      %20 = sbr.rel (0) target = $region21
    $region20: #{graph_decoder_forward.1} parent=1 // pred_region
      _
    $region21: #{graph_decoder_forward.1} parent=1 // pred_fallthru
      _
    %v22 = vld [vmem:[%s0] sm:$0xf]
    %v23 = vld [vmem:[%s0 + $0x4] sm:$0xf]
    %v24 = vld [vmem:[%s1] sm:$0xf]
    %v25 = vld [vmem:[%s1 + $0x4] sm:$0xf]
    %v26 = vld [vmem:[%s1 + $0x8] sm:$0xf]
    %v27 = vld [vmem:[%s1 + $0xc] sm:$0xf]
    %v28 = vld [vmem:[%s1 + $0x10] sm:$0xf]
    %v29 = vld [vmem:[%s1 + $0x14] sm:$0xf]
    %v30 = vld [vmem:[%s1 + $0x18] sm:$0xf]
    %v31 = vld [vmem:[%s1 + $0x1c] sm:$0xf]
    %v32 = vld [vmem:[%s1 + $0x20] sm:$0xf]
    %v33 = vld [vmem:[%s1 + $0x24] sm:$0xf]
    %v34 = vld [vmem:[%s1 + $0x28] sm:$0xf]
    %v35 = vld [vmem:[%s1 + $0x2c] sm:$0xf]
    %v36 = vld [vmem:[%s1 + $0x30] sm:$0xf]
    %v37 = vld [vmem:[%s1 + $0x34] sm:$0xf]
    %v38 = vld [vmem:[%s1 + $0x38] sm:$0xf]
    %v39 = vld [vmem:[%s1 + $0x3c] sm:$0xf]
    %v40 = vld [vmem:[%s2] sm:$0x1]
    %v42 = vlaneseq
    %v43 = vshrl.u32 %v42, 7
    %v44 = vsub.s32 0, %v43
    %v45 = vrot.slane %v40, %v44
    %v49 = vunpack.c.l.b16 %v22
    %v50 = vunpack.c.l.b16 %v23
    %v51 = vpack.c.b16 %v50, %v49
    %v69 = vunpack.c.l.b16 %v24
    %v70 = vunpack.c.l.b16 %v25
    %v71 = vunpack.c.l.b16 %v26
    %v72 = vunpack.c.l.b16 %v27
    %v73 = vunpack.c.l.b16 %v28
    %v74 = vunpack.c.l.b16 %v29
    %v75 = vunpack.c.l.b16 %v30
    %v76 = vunpack.c.l.b16 %v31
    %v77 = vunpack.c.l.b16 %v32
    %v78 = vunpack.c.l.b16 %v33
    %v79 = vunpack.c.l.b16 %v34
    %v80 = vunpack.c.l.b16 %v35
    %v81 = vunpack.c.l.b16 %v36
    %v82 = vunpack.c.l.b16 %v37
    %v83 = vunpack.c.l.b16 %v38
    %v84 = vunpack.c.l.b16 %v39
    %v85 = vpack.c.b16 %v70, %v69
    %v86 = vpack.c.b16 %v72, %v71
    %v87 = vpack.c.b16 %v74, %v73
    %v88 = vpack.c.b16 %v76, %v75
    %v89 = vpack.c.b16 %v78, %v77
    %v90 = vpack.c.b16 %v80, %v79
    %v91 = vpack.c.b16 %v82, %v81
    %v92 = vpack.c.b16 %v84, %v83
    %101 = vmatprep.subr.bf16.mxu0 0
    %102 = vmatpush1.bf16.msra.mxu0 %v92
    %103 = vmatprep.subr.bf16.mxu0 0
    %104 = vmatpush1.bf16.msra.mxu0 %v91
    %105 = vmatprep.subr.bf16.mxu0 0
    %106 = vmatpush1.bf16.msra.mxu0 %v90
    %107 = vmatprep.subr.bf16.mxu0 0
    %108 = vmatpush1.bf16.msra.mxu0 %v89
    %109 = vmatprep.subr.bf16.mxu0 0
    %110 = vmatpush1.bf16.msra.mxu0 %v88
    %111 = vmatprep.subr.bf16.mxu0 0
    %112 = vmatpush1.bf16.msra.mxu0 %v87
    %113 = vmatprep.subr.bf16.mxu0 0
    %114 = vmatpush1.bf16.msra.mxu0 %v86
    %115 = vmatprep.subr.bf16.mxu0 0
    %116 = vmatpush1.bf16.msra.mxu0 %v85
    %117 = vmatprep.subr.bf16.mxu0 0
    %118 = vmatpush2.bf16.msra.mxu0 0
    %119 = vmatprep.subr.bf16.mxu0 0
    %120 = vmatpush2.bf16.msra.mxu0 0
    %121 = vmatprep.subr.bf16.mxu0 0
    %122 = vmatpush2.bf16.msra.mxu0 0
    %123 = vmatprep.subr.bf16.mxu0 0
    %124 = vmatpush2.bf16.msra.mxu0 0
    %125 = vmatprep.subr.bf16.mxu0 0
    %126 = vmatpush2.bf16.msra.mxu0 0
    %127 = vmatprep.subr.bf16.mxu0 0
    %128 = vmatpush2.bf16.msra.mxu0 0
    %129 = vmatprep.subr.bf16.mxu0 0
    %130 = vmatpush2.bf16.msra.mxu0 0
    %131 = vmatprep.subr.bf16.mxu0 0
    %132 = vmatpush2.bf16.msra.mxu0 0
    %133 = vmatprep.mubr.bf16.mxu0 0
    %134 = vmatmul.mubr.bf16.gmra.mxu0 %v51
    %v135 = vpop.f32.mrf.mxu0
    %v136 = vadd.f32 %v45, %v135
    %v137 = vpop.f32.mrf.mxu0
    %v138 = vpop.f32.mrf.mxu0
    %v139 = vadd.f32 %v45, %v138
    %v140 = vpop.f32.mrf.mxu0
    %141 = vdwg.mxu0
    %v142 = vmax.f32 %v136, 0.0
    %v143 = vmax.f32 %v139, 0.0
    %v144 = vpack.c.bf16 %v143, %v142
    %v145 = vld [vmem:[%s3] sm:$0xf]
    %v146 = vld [vmem:[%s3 + $0x4] sm:$0xf]
    %v147 = vld [vmem:[%s3 + $0x8] sm:$0xf]
    %v148 = vld [vmem:[%s3 + $0xc] sm:$0xf]
    %v149 = vld [vmem:[%s3 + $0x10] sm:$0xf]
    %v150 = vld [vmem:[%s3 + $0x14] sm:$0xf]
    %v151 = vld [vmem:[%s3 + $0x18] sm:$0xf]
    %v152 = vld [vmem:[%s3 + $0x1c] sm:$0xf]
    %v153 = vld [vmem:[%s3 + $0x20] sm:$0xf]
    %v154 = vld [vmem:[%s3 + $0x24] sm:$0xf]
    %v155 = vld [vmem:[%s3 + $0x28] sm:$0xf]
    %v156 = vld [vmem:[%s3 + $0x2c] sm:$0xf]
    %v157 = vld [vmem:[%s3 + $0x30] sm:$0xf]
    %v158 = vld [vmem:[%s3 + $0x34] sm:$0xf]
    %v159 = vld [vmem:[%s3 + $0x38] sm:$0xf]
    %v160 = vld [vmem:[%s3 + $0x3c] sm:$0xf]
    %v161 = vld [vmem:[%s4] sm:$0x1]
    %v163 = vlaneseq
    %v164 = vshrl.u32 %v163, 7
    %v165 = vsub.s32 0, %v164
    %v166 = vrot.slane %v161, %v165
    %v184 = vunpack.c.l.b16 %v145
    %v185 = vunpack.c.l.b16 %v146
    %v186 = vunpack.c.l.b16 %v147
    %v187 = vunpack.c.l.b16 %v148
    %v188 = vunpack.c.l.b16 %v149
    %v189 = vunpack.c.l.b16 %v150
    %v190 = vunpack.c.l.b16 %v151
    %v191 = vunpack.c.l.b16 %v152
    %v192 = vunpack.c.l.b16 %v153
    %v193 = vunpack.c.l.b16 %v154
    %v194 = vunpack.c.l.b16 %v155
    %v195 = vunpack.c.l.b16 %v156
    %v196 = vunpack.c.l.b16 %v157
    %v197 = vunpack.c.l.b16 %v158
    %v198 = vunpack.c.l.b16 %v159
    %v199 = vunpack.c.l.b16 %v160
    %v200 = vpack.c.b16 %v185, %v184
    %v201 = vpack.c.b16 %v187, %v186
    %v202 = vpack.c.b16 %v189, %v188
    %v203 = vpack.c.b16 %v191, %v190
    %v204 = vpack.c.b16 %v193, %v192
    %v205 = vpack.c.b16 %v195, %v194
    %v206 = vpack.c.b16 %v197, %v196
    %v207 = vpack.c.b16 %v199, %v198
    %216 = vmatprep.subr.bf16.mxu0 0
    %217 = vmatpush1.bf16.msra.mxu0 %v207
    %218 = vmatprep.subr.bf16.mxu0 0
    %219 = vmatpush1.bf16.msra.mxu0 %v206
    %220 = vmatprep.subr.bf16.mxu0 0
    %221 = vmatpush1.bf16.msra.mxu0 %v205
    %222 = vmatprep.subr.bf16.mxu0 0
    %223 = vmatpush1.bf16.msra.mxu0 %v204
    %224 = vmatprep.subr.bf16.mxu0 0
    %225 = vmatpush1.bf16.msra.mxu0 %v203
    %226 = vmatprep.subr.bf16.mxu0 0
    %227 = vmatpush1.bf16.msra.mxu0 %v202
    %228 = vmatprep.subr.bf16.mxu0 0
    %229 = vmatpush1.bf16.msra.mxu0 %v201
    %230 = vmatprep.subr.bf16.mxu0 0
    %231 = vmatpush1.bf16.msra.mxu0 %v200
    %232 = vmatprep.subr.bf16.mxu0 0
    %233 = vmatpush2.bf16.msra.mxu0 0
    %234 = vmatprep.subr.bf16.mxu0 0
    %235 = vmatpush2.bf16.msra.mxu0 0
    %236 = vmatprep.subr.bf16.mxu0 0
    %237 = vmatpush2.bf16.msra.mxu0 0
    %238 = vmatprep.subr.bf16.mxu0 0
    %239 = vmatpush2.bf16.msra.mxu0 0
    %240 = vmatprep.subr.bf16.mxu0 0
    %241 = vmatpush2.bf16.msra.mxu0 0
    %242 = vmatprep.subr.bf16.mxu0 0
    %243 = vmatpush2.bf16.msra.mxu0 0
    %244 = vmatprep.subr.bf16.mxu0 0
    %245 = vmatpush2.bf16.msra.mxu0 0
    %246 = vmatprep.subr.bf16.mxu0 0
    %247 = vmatpush2.bf16.msra.mxu0 0
    %248 = vmatprep.mubr.bf16.mxu0 0
    %249 = vmatmul.mubr.bf16.gmra.mxu0 %v144
    %v250 = vpop.f32.mrf.mxu0
    %v251 = vadd.f32 %v166, %v250
    %v252 = vpop.f32.mrf.mxu0
    %v253 = vpop.f32.mrf.mxu0
    %v254 = vadd.f32 %v166, %v253
    %v255 = vpop.f32.mrf.mxu0
    %256 = vdwg.mxu0
    %v257 = vxor.u32 %v251, 2147483648
    %v258 = vxor.u32 %v254, 2147483648
    %v259 = vmul.f32 %v257, 1.442695
    %v260 = vpow.pop %v259
    %v261 = vmul.f32 %v258, 1.442695
    %v262 = vpow.pop %v261
    %v263 = vadd.f32 %v260, 1.0
    %v264 = vadd.f32 %v262, 1.0
    %v265 = vrcp.pop %v263
    %v266 = vmul.f32 1.0, %v265
    %v267 = vrcp.pop %v264
    %v268 = vmul.f32 1.0, %v267
    %269 = vst [vmem:[#allocation2] sm:$0xff] %v266
    %270 = vst [vmem:[#allocation2 + $0x8] sm:$0xff] %v268
    // Predicated region
    $region22: #{graph_decoder_forward.1} parent=1 // pred_check
      _
    $region23: #{graph_decoder_forward.1} parent=1 // pred_check_branch
      %272 = sbr.rel (0) target = $region25
    $region24: #{graph_decoder_forward.1} parent=1 // pred_region
      %s274 = ssub.s32 256, 256
      %275 = vsyncadd [#allocation3], %s274
      %s276 = sshll.u32 [#allocation2], 4
      %s277 = int_to_ptr.vmem [resolvable:$true] %s276
      %282 = dma.vmem_to_hbm [thread:$0]  %s277, 256, %s5, [#allocation3], 128, 128, 8
    $region25: #{graph_decoder_forward.1} parent=1 // pred_fallthru
      _
    // Predicated region
    $region26: #{graph_decoder_forward.1} parent=1 // pred_check
      _
    $region27: #{graph_decoder_forward.1} parent=1 // pred_check_branch
      %284 = sbr.rel (0) target = $region29
    $region28: #{graph_decoder_forward.1} parent=1 // pred_region
      %285 = dma.done [#allocation3], 256
    $region29: #{graph_decoder_forward.1} parent=1 // pred_fallthru
      _
    %286 = vsyncpa [#allocation3], 1

</llo_original>
